<compile_context>
chip_gen: v5e
topology: v5e:2x2
jax: 0.10.0
libtpu: 0.0.40
codegen_flags: <defaults>
</compile_context>

<pallas_src>
import jax
import jax.numpy as jnp
from jax.experimental import pallas as pl
from jax.experimental.pallas import tpu as pltpu

IN_SHAPE = 5
HIDDEN = 3
ENC_SHAPE = 1
BN_EPS = 1e-5

MAX_TILE_B = 131072        # lanes per grid step cap (~10.5 MB double-buffered in+out)
N_DESIRED_TILES = 8        # aim for >=8 grid steps at large B (v7x 2-TC split + pipelining)

# ---- packed-parameter layout (row-major, weights stored as [in, out]) ----
W1_OFF = 0                                  # [IN_SHAPE, HIDDEN]   -> 15
B1_OFF = W1_OFF + IN_SHAPE * HIDDEN         # [HIDDEN]             -> 3
W2_OFF = B1_OFF + HIDDEN                    # [HIDDEN, ENC_SHAPE]  -> 3
B2_OFF = W2_OFF + HIDDEN * ENC_SHAPE        # [ENC_SHAPE]          -> 1
W3_OFF = B2_OFF + ENC_SHAPE                 # [ENC_SHAPE, HIDDEN]  -> 3   (BN folded in)
B3_OFF = W3_OFF + ENC_SHAPE * HIDDEN        # [HIDDEN]             -> 3   (BN folded in)
W4_OFF = B3_OFF + HIDDEN                    # [HIDDEN, IN_SHAPE]   -> 15
B4_OFF = W4_OFF + HIDDEN * IN_SHAPE         # [IN_SHAPE]           -> 5
N_PARAMS = B4_OFF + IN_SHAPE                # 48 scalars total


def _round_up(x, m):
    return ((x + m - 1) // m) * m


def _choose_tile_b(batch):
    """Tile (lanes per grid step): multiple of 1024, capped, >=8 steps for big batches."""
    b = max(_round_up(batch, 1024), 1024)
    tile = _round_up(-(-b // N_DESIRED_TILES), 1024)
    return max(1024, min(MAX_TILE_B, tile))


def _ae_kernel(p_ref, x_ref, out_ref):
    """p_ref: SMEM [N_PARAMS] f32; x_ref/out_ref: VMEM [IN_SHAPE, tile_rows, 128] f32.

    Each channel x_ref[i] / out_ref[k] is a dense (tile_rows, 128) tile -> full-density
    VPU broadcast-FMAs and EUP tanh; no sub-sublane slices, no concatenate epilogue."""
    xs = [x_ref[i] for i in range(IN_SHAPE)]              # 5 x [tile_rows, 128]

    # ---- encoder: Linear(5->3) + Tanh ----
    hs = []
    for j in range(HIDDEN):
        acc = xs[0] * p_ref[W1_OFF + 0 * HIDDEN + j]
        for i in range(1, IN_SHAPE):
            acc = acc + xs[i] * p_ref[W1_OFF + i * HIDDEN + j]
        hs.append(jnp.tanh(acc + p_ref[B1_OFF + j]))
    # Dropout(0.1) -> identity in eval.

    # ---- encoder: Linear(3->1) + Tanh ----
    enc = hs[0] * p_ref[W2_OFF + 0]
    for j in range(1, HIDDEN):
        enc = enc + hs[j] * p_ref[W2_OFF + j]
    enc = jnp.tanh(enc + p_ref[B2_OFF])

    # ---- decoder: (BatchNorm folded) Linear(1->3) + Tanh ----
    h2 = [jnp.tanh(enc * p_ref[W3_OFF + j] + p_ref[B3_OFF + j]) for j in range(HIDDEN)]
    # Dropout(0.1) -> identity in eval.

    # ---- decoder: Linear(3->5), per-channel stores ----
    for k in range(IN_SHAPE):
        acc = h2[0] * p_ref[W4_OFF + 0 * IN_SHAPE + k]
        for j in range(1, HIDDEN):
            acc = acc + h2[j] * p_ref[W4_OFF + j * IN_SHAPE + k]
        out_ref[k] = (acc + p_ref[B4_OFF + k]).astype(out_ref.dtype)


def _pack_params(params):
    """Fold eval-mode BatchNorm1d into the decoder's first Linear and pack everything
    into one flat f32 array (read as scalars from SMEM inside the kernel)."""
    s = params["bn_w"] * jax.lax.rsqrt(params["bn_var"] + BN_EPS)          # [ENC]
    w3f = params["w3"] * s[:, None]                                        # [ENC, HIDDEN]
    b3f = params["b3"] + (params["bn_b"] - params["bn_mean"] * s) @ params["w3"]
    packed = jnp.concatenate([
        params["w1"].reshape(-1), params["b1"].reshape(-1),
        params["w2"].reshape(-1), params["b2"].reshape(-1),
        w3f.reshape(-1), b3f.reshape(-1),
        params["w4"].reshape(-1), params["b4"].reshape(-1),
    ]).astype(jnp.float32)
    assert packed.shape == (N_PARAMS,)
    return packed


def _run_kernel(x3, params, tile_b):
    """x3: [IN_SHAPE, B_pad//128, 128] f32 (lane-dense). Returns same shape."""
    _, nblk, _ = x3.shape
    tr = tile_b // 128
    assert nblk % tr == 0 and tr % 8 == 0
    grid = (nblk // tr,)
    packed = _pack_params(params)
    b_pad = nblk * 128

    return pl.pallas_call(
        _ae_kernel,
        out_shape=jax.ShapeDtypeStruct(x3.shape, jnp.float32),
        grid=grid,
        in_specs=[
            pl.BlockSpec(memory_space=pltpu.MemorySpace.SMEM),           # packed params
            pl.BlockSpec((IN_SHAPE, tr, 128), lambda i: (0, i, 0)),      # x tile
        ],
        out_specs=pl.BlockSpec((IN_SHAPE, tr, 128), lambda i: (0, i, 0)),
        compiler_params=pltpu.CompilerParams(
            dimension_semantics=("parallel",),            # v7x: shard batch over 2 TCs
            vmem_limit_bytes=32 * 1024 * 1024,            # ~80*tile_b working set + temps
        ),
        cost_estimate=pl.CostEstimate(
            flops=80 * b_pad,                             # ~72 MACs + bias adds / sample
            transcendentals=7 * b_pad,                    # 7 tanh per sample
            bytes_accessed=2 * b_pad * IN_SHAPE * 4,      # read + write activations
        ),
    )(packed, x3)


def autoencoder_forward_lane_major(x_fm, params, *, tile_b=None):
    """Fast path: x_fm is feature-major [IN_SHAPE, B] -> returns [IN_SHAPE, B].

    No transpose passes: the reshape [IN_SHAPE, B] -> [IN_SHAPE, B//128, 128] of a
    contiguous array is free (padding copy only if B is not a multiple of the tile)."""
    assert x_fm.shape[0] == IN_SHAPE
    B = x_fm.shape[1]
    if tile_b is None:
        tile_b = _choose_tile_b(B)
    B_pad = _round_up(B, tile_b)
    xp = x_fm.astype(jnp.float32)
    if B_pad != B:
        xp = jnp.pad(xp, ((0, 0), (0, B_pad - B)))
    x3 = xp.reshape(IN_SHAPE, B_pad // 128, 128)
    out3 = _run_kernel(x3, params, tile_b)
    return out3.reshape(IN_SHAPE, B_pad)[:, :B]


def autoencoder_forward(x, params, *, tile_b=None):
    """PyTorch-compatible interface: x [B, IN_SHAPE] -> reconstruction [B, IN_SHAPE].

    NOTE: this path pays one HBM relayout pass on input and one on output (sample-major
    -> lane-dense feature-major and back). If the producer/consumer can keep data
    feature-major, use autoencoder_forward_lane_major() and skip both passes."""
    B = x.shape[0]
    assert x.shape[1] == IN_SHAPE
    if tile_b is None:
        tile_b = _choose_tile_b(B)
    B_pad = _round_up(B, tile_b)
    xp = x.astype(jnp.float32)
    if B_pad != B:
        xp = jnp.pad(xp, ((0, B_pad - B), (0, 0)))
    # [B_pad, 5] -> lane-dense [5, B_pad//128, 128]
    x3 = xp.reshape(B_pad // 128, 128, IN_SHAPE).transpose(2, 0, 1)
    out3 = _run_kernel(x3, params, tile_b)
    out = out3.transpose(1, 2, 0).reshape(B_pad, IN_SHAPE)
    return out[:B]


def init_params(key):
    """Matches Autoencoder.initialize_weights(): W ~ N(0, 0.02), b = 0.
    BatchNorm1d defaults: weight=1, bias=0, running_mean=0, running_var=1."""
    k1, k2, k3, k4 = jax.random.split(key, 4)
    n = lambda k, shp: (0.02 * jax.random.normal(k, shp)).astype(jnp.float32)
    z = lambda shp: jnp.zeros(shp, jnp.float32)
    o = lambda shp: jnp.ones(shp, jnp.float32)
    return {
        # encoder
        "w1": n(k1, (IN_SHAPE, HIDDEN)), "b1": z((HIDDEN,)),
        "w2": n(k2, (HIDDEN, ENC_SHAPE)), "b2": z((ENC_SHAPE,)),
        # decoder
        "bn_w": o((ENC_SHAPE,)), "bn_b": z((ENC_SHAPE,)),
        "bn_mean": z((ENC_SHAPE,)), "bn_var": o((ENC_SHAPE,)),
        "w3": n(k3, (ENC_SHAPE, HIDDEN)), "b3": z((HIDDEN,)),
        "w4": n(k4, (HIDDEN, IN_SHAPE)), "b4": z((IN_SHAPE,)),
    }


def _reference(x, p):
    """Plain-JAX reference (eval mode) for sanity checking. x: [B, IN_SHAPE]."""
    h = jnp.tanh(x @ p["w1"] + p["b1"])
    enc = jnp.tanh(h @ p["w2"] + p["b2"])
    normed = (enc - p["bn_mean"]) * jax.lax.rsqrt(p["bn_var"] + BN_EPS) * p["bn_w"] + p["bn_b"]
    h2 = jnp.tanh(normed @ p["w3"] + p["b3"])
    return h2 @ p["w4"] + p["b4"]


if __name__ == "__main__":
    key = jax.random.PRNGKey(0)
    kx, kp, kb, kx2 = jax.random.split(key, 4)

    B = 8
    x = jax.random.normal(kx, (B, IN_SHAPE), dtype=jnp.float32)
    params = init_params(kp)

    # Non-trivial BatchNorm running stats so the folded BN path is actually exercised.
    kb1, kb2, kb3, kb4 = jax.random.split(kb, 4)
    params["bn_mean"] = 0.1 * jax.random.normal(kb1, (ENC_SHAPE,), dtype=jnp.float32)
    params["bn_var"] = 1.0 + 0.2 * jax.random.uniform(kb2, (ENC_SHAPE,), dtype=jnp.float32)
    params["bn_w"] = 1.0 + 0.1 * jax.random.normal(kb3, (ENC_SHAPE,), dtype=jnp.float32)
    params["bn_b"] = 0.1 * jax.random.normal(kb4, (ENC_SHAPE,), dtype=jnp.float32)

    # PyTorch-compatible [B, IN_SHAPE] path.
    out = jax.block_until_ready(autoencoder_forward(x, params))
    ref = _reference(x, params)
    assert out.shape == (B, IN_SHAPE)
    assert jnp.allclose(out, ref, atol=2e-5, rtol=1e-4), "mismatch vs reference (compat path)"

    # Feature-major fast path [IN_SHAPE, B] (no transpose passes).
    B2 = 256
    x2 = jax.random.normal(kx2, (IN_SHAPE, B2), dtype=jnp.float32)
    out2 = jax.block_until_ready(autoencoder_forward_lane_major(x2, params))
    ref2 = _reference(x2.T, params).T
    assert out2.shape == (IN_SHAPE, B2)
    assert jnp.allclose(out2, ref2, atol=2e-5, rtol=1e-4), "mismatch vs reference (lane-major)"

    print("KERNEL_OK")
</pallas_src>

<mosaic_0001>
module attributes {stable_mosaic.version = 11 : i64} {
  func.func @_ae_kernel(%arg0: i32, %arg1: memref<48xf32, #tpu.memory_space<smem>>, %arg2: memref<5x8x128xf32, #tpu.memory_space<vmem>>, %arg3: memref<5x8x128xf32, #tpu.memory_space<vmem>>) attributes {dimension_semantics = [#tpu.dimension_semantics<parallel>], iteration_bounds = array<i64: 1>, scalar_prefetch = 0 : i64, scratch_operands = 0 : i64, tpu.core_type = #tpu.core_type<tc>, window_params = [{transform_indices = @transform_0, window_bounds = array<i64: 48>}, {transform_indices = @transform_1, window_bounds = array<i64: 5, 8, 128>}, {transform_indices = @transform_2, window_bounds = array<i64: 5, 8, 128>}]} {
    %c0 = arith.constant 0 : index
    %c0_0 = arith.constant 0 : index
    %c0_1 = arith.constant 0 : index
    %0 = vector.load %arg2[%c0, %c0_0, %c0_1] : memref<5x8x128xf32, #tpu.memory_space<vmem>>, vector<1x8x128xf32>
    %1 = vector.shape_cast %0 : vector<1x8x128xf32> to vector<8x128xf32>
    %c1 = arith.constant 1 : index
    %c0_2 = arith.constant 0 : index
    %c0_3 = arith.constant 0 : index
    %2 = vector.load %arg2[%c1, %c0_2, %c0_3] : memref<5x8x128xf32, #tpu.memory_space<vmem>>, vector<1x8x128xf32>
    %3 = vector.shape_cast %2 : vector<1x8x128xf32> to vector<8x128xf32>
    %c2 = arith.constant 2 : index
    %c0_4 = arith.constant 0 : index
    %c0_5 = arith.constant 0 : index
    %4 = vector.load %arg2[%c2, %c0_4, %c0_5] : memref<5x8x128xf32, #tpu.memory_space<vmem>>, vector<1x8x128xf32>
    %5 = vector.shape_cast %4 : vector<1x8x128xf32> to vector<8x128xf32>
    %c3 = arith.constant 3 : index
    %c0_6 = arith.constant 0 : index
    %c0_7 = arith.constant 0 : index
    %6 = vector.load %arg2[%c3, %c0_6, %c0_7] : memref<5x8x128xf32, #tpu.memory_space<vmem>>, vector<1x8x128xf32>
    %7 = vector.shape_cast %6 : vector<1x8x128xf32> to vector<8x128xf32>
    %c4 = arith.constant 4 : index
    %c0_8 = arith.constant 0 : index
    %c0_9 = arith.constant 0 : index
    %8 = vector.load %arg2[%c4, %c0_8, %c0_9] : memref<5x8x128xf32, #tpu.memory_space<vmem>>, vector<1x8x128xf32>
    %9 = vector.shape_cast %8 : vector<1x8x128xf32> to vector<8x128xf32>
    %c0_10 = arith.constant 0 : index
    %10 = memref.load %arg1[%c0_10] : memref<48xf32, #tpu.memory_space<smem>>
    %11 = vector.broadcast %10 : f32 to vector<8x128xf32>
    %12 = arith.mulf %1, %11 : vector<8x128xf32>
    %c3_11 = arith.constant 3 : index
    %13 = memref.load %arg1[%c3_11] : memref<48xf32, #tpu.memory_space<smem>>
    %14 = vector.broadcast %13 : f32 to vector<8x128xf32>
    %15 = arith.mulf %3, %14 : vector<8x128xf32>
    %16 = arith.addf %12, %15 : vector<8x128xf32>
    %c6 = arith.constant 6 : index
    %17 = memref.load %arg1[%c6] : memref<48xf32, #tpu.memory_space<smem>>
    %18 = vector.broadcast %17 : f32 to vector<8x128xf32>
    %19 = arith.mulf %5, %18 : vector<8x128xf32>
    %20 = arith.addf %16, %19 : vector<8x128xf32>
    %c9 = arith.constant 9 : index
    %21 = memref.load %arg1[%c9] : memref<48xf32, #tpu.memory_space<smem>>
    %22 = vector.broadcast %21 : f32 to vector<8x128xf32>
    %23 = arith.mulf %7, %22 : vector<8x128xf32>
    %24 = arith.addf %20, %23 : vector<8x128xf32>
    %c12 = arith.constant 12 : index
    %25 = memref.load %arg1[%c12] : memref<48xf32, #tpu.memory_space<smem>>
    %26 = vector.broadcast %25 : f32 to vector<8x128xf32>
    %27 = arith.mulf %9, %26 : vector<8x128xf32>
    %28 = arith.addf %24, %27 : vector<8x128xf32>
    %c15 = arith.constant 15 : index
    %29 = memref.load %arg1[%c15] : memref<48xf32, #tpu.memory_space<smem>>
    %30 = vector.broadcast %29 : f32 to vector<8x128xf32>
    %31 = arith.addf %28, %30 : vector<8x128xf32>
    %32 = math.tanh %31 : vector<8x128xf32>
    %c1_12 = arith.constant 1 : index
    %33 = memref.load %arg1[%c1_12] : memref<48xf32, #tpu.memory_space<smem>>
    %34 = vector.broadcast %33 : f32 to vector<8x128xf32>
    %35 = arith.mulf %1, %34 : vector<8x128xf32>
    %c4_13 = arith.constant 4 : index
    %36 = memref.load %arg1[%c4_13] : memref<48xf32, #tpu.memory_space<smem>>
    %37 = vector.broadcast %36 : f32 to vector<8x128xf32>
    %38 = arith.mulf %3, %37 : vector<8x128xf32>
    %39 = arith.addf %35, %38 : vector<8x128xf32>
    %c7 = arith.constant 7 : index
    %40 = memref.load %arg1[%c7] : memref<48xf32, #tpu.memory_space<smem>>
    %41 = vector.broadcast %40 : f32 to vector<8x128xf32>
    %42 = arith.mulf %5, %41 : vector<8x128xf32>
    %43 = arith.addf %39, %42 : vector<8x128xf32>
    %c10 = arith.constant 10 : index
    %44 = memref.load %arg1[%c10] : memref<48xf32, #tpu.memory_space<smem>>
    %45 = vector.broadcast %44 : f32 to vector<8x128xf32>
    %46 = arith.mulf %7, %45 : vector<8x128xf32>
    %47 = arith.addf %43, %46 : vector<8x128xf32>
    %c13 = arith.constant 13 : index
    %48 = memref.load %arg1[%c13] : memref<48xf32, #tpu.memory_space<smem>>
    %49 = vector.broadcast %48 : f32 to vector<8x128xf32>
    %50 = arith.mulf %9, %49 : vector<8x128xf32>
    %51 = arith.addf %47, %50 : vector<8x128xf32>
    %c16 = arith.constant 16 : index
    %52 = memref.load %arg1[%c16] : memref<48xf32, #tpu.memory_space<smem>>
    %53 = vector.broadcast %52 : f32 to vector<8x128xf32>
    %54 = arith.addf %51, %53 : vector<8x128xf32>
    %55 = math.tanh %54 : vector<8x128xf32>
    %c2_14 = arith.constant 2 : index
    %56 = memref.load %arg1[%c2_14] : memref<48xf32, #tpu.memory_space<smem>>
    %57 = vector.broadcast %56 : f32 to vector<8x128xf32>
    %58 = arith.mulf %1, %57 : vector<8x128xf32>
    %c5 = arith.constant 5 : index
    %59 = memref.load %arg1[%c5] : memref<48xf32, #tpu.memory_space<smem>>
    %60 = vector.broadcast %59 : f32 to vector<8x128xf32>
    %61 = arith.mulf %3, %60 : vector<8x128xf32>
    %62 = arith.addf %58, %61 : vector<8x128xf32>
    %c8 = arith.constant 8 : index
    %63 = memref.load %arg1[%c8] : memref<48xf32, #tpu.memory_space<smem>>
    %64 = vector.broadcast %63 : f32 to vector<8x128xf32>
    %65 = arith.mulf %5, %64 : vector<8x128xf32>
    %66 = arith.addf %62, %65 : vector<8x128xf32>
    %c11 = arith.constant 11 : index
    %67 = memref.load %arg1[%c11] : memref<48xf32, #tpu.memory_space<smem>>
    %68 = vector.broadcast %67 : f32 to vector<8x128xf32>
    %69 = arith.mulf %7, %68 : vector<8x128xf32>
    %70 = arith.addf %66, %69 : vector<8x128xf32>
    %c14 = arith.constant 14 : index
    %71 = memref.load %arg1[%c14] : memref<48xf32, #tpu.memory_space<smem>>
    %72 = vector.broadcast %71 : f32 to vector<8x128xf32>
    %73 = arith.mulf %9, %72 : vector<8x128xf32>
    %74 = arith.addf %70, %73 : vector<8x128xf32>
    %c17 = arith.constant 17 : index
    %75 = memref.load %arg1[%c17] : memref<48xf32, #tpu.memory_space<smem>>
    %76 = vector.broadcast %75 : f32 to vector<8x128xf32>
    %77 = arith.addf %74, %76 : vector<8x128xf32>
    %78 = math.tanh %77 : vector<8x128xf32>
    %c18 = arith.constant 18 : index
    %79 = memref.load %arg1[%c18] : memref<48xf32, #tpu.memory_space<smem>>
    %80 = vector.broadcast %79 : f32 to vector<8x128xf32>
    %81 = arith.mulf %32, %80 : vector<8x128xf32>
    %c19 = arith.constant 19 : index
    %82 = memref.load %arg1[%c19] : memref<48xf32, #tpu.memory_space<smem>>
    %83 = vector.broadcast %82 : f32 to vector<8x128xf32>
    %84 = arith.mulf %55, %83 : vector<8x128xf32>
    %85 = arith.addf %81, %84 : vector<8x128xf32>
    %c20 = arith.constant 20 : index
    %86 = memref.load %arg1[%c20] : memref<48xf32, #tpu.memory_space<smem>>
    %87 = vector.broadcast %86 : f32 to vector<8x128xf32>
    %88 = arith.mulf %78, %87 : vector<8x128xf32>
    %89 = arith.addf %85, %88 : vector<8x128xf32>
    %c21 = arith.constant 21 : index
    %90 = memref.load %arg1[%c21] : memref<48xf32, #tpu.memory_space<smem>>
    %91 = vector.broadcast %90 : f32 to vector<8x128xf32>
    %92 = arith.addf %89, %91 : vector<8x128xf32>
    %93 = math.tanh %92 : vector<8x128xf32>
    %c22 = arith.constant 22 : index
    %94 = memref.load %arg1[%c22] : memref<48xf32, #tpu.memory_space<smem>>
    %95 = vector.broadcast %94 : f32 to vector<8x128xf32>
    %96 = arith.mulf %93, %95 : vector<8x128xf32>
    %c25 = arith.constant 25 : index
    %97 = memref.load %arg1[%c25] : memref<48xf32, #tpu.memory_space<smem>>
    %98 = vector.broadcast %97 : f32 to vector<8x128xf32>
    %99 = arith.addf %96, %98 : vector<8x128xf32>
    %100 = math.tanh %99 : vector<8x128xf32>
    %c23 = arith.constant 23 : index
    %101 = memref.load %arg1[%c23] : memref<48xf32, #tpu.memory_space<smem>>
    %102 = vector.broadcast %101 : f32 to vector<8x128xf32>
    %103 = arith.mulf %93, %102 : vector<8x128xf32>
    %c26 = arith.constant 26 : index
    %104 = memref.load %arg1[%c26] : memref<48xf32, #tpu.memory_space<smem>>
    %105 = vector.broadcast %104 : f32 to vector<8x128xf32>
    %106 = arith.addf %103, %105 : vector<8x128xf32>
    %107 = math.tanh %106 : vector<8x128xf32>
    %c24 = arith.constant 24 : index
    %108 = memref.load %arg1[%c24] : memref<48xf32, #tpu.memory_space<smem>>
    %109 = vector.broadcast %108 : f32 to vector<8x128xf32>
    %110 = arith.mulf %93, %109 : vector<8x128xf32>
    %c27 = arith.constant 27 : index
    %111 = memref.load %arg1[%c27] : memref<48xf32, #tpu.memory_space<smem>>
    %112 = vector.broadcast %111 : f32 to vector<8x128xf32>
    %113 = arith.addf %110, %112 : vector<8x128xf32>
    %114 = math.tanh %113 : vector<8x128xf32>
    %c28 = arith.constant 28 : index
    %115 = memref.load %arg1[%c28] : memref<48xf32, #tpu.memory_space<smem>>
    %116 = vector.broadcast %115 : f32 to vector<8x128xf32>
    %117 = arith.mulf %100, %116 : vector<8x128xf32>
    %c33 = arith.constant 33 : index
    %118 = memref.load %arg1[%c33] : memref<48xf32, #tpu.memory_space<smem>>
    %119 = vector.broadcast %118 : f32 to vector<8x128xf32>
    %120 = arith.mulf %107, %119 : vector<8x128xf32>
    %121 = arith.addf %117, %120 : vector<8x128xf32>
    %c38 = arith.constant 38 : index
    %122 = memref.load %arg1[%c38] : memref<48xf32, #tpu.memory_space<smem>>
    %123 = vector.broadcast %122 : f32 to vector<8x128xf32>
    %124 = arith.mulf %114, %123 : vector<8x128xf32>
    %125 = arith.addf %121, %124 : vector<8x128xf32>
    %c43 = arith.constant 43 : index
    %126 = memref.load %arg1[%c43] : memref<48xf32, #tpu.memory_space<smem>>
    %127 = vector.broadcast %126 : f32 to vector<8x128xf32>
    %128 = arith.addf %125, %127 : vector<8x128xf32>
    %c0_15 = arith.constant 0 : index
    %c0_16 = arith.constant 0 : index
    %c0_17 = arith.constant 0 : index
    %129 = vector.load %arg3[%c0_15, %c0_16, %c0_17] : memref<5x8x128xf32, #tpu.memory_space<vmem>>, vector<1x8x128xf32>
    %130 = vector.shape_cast %129 : vector<1x8x128xf32> to vector<8x128xf32>
    %131 = vector.shape_cast %128 : vector<8x128xf32> to vector<1x8x128xf32>
    tpu.vector_store %arg3[%c0_15, %c0_16, %c0_17], %131 {strides = array<i32>} : memref<5x8x128xf32, #tpu.memory_space<vmem>>, vector<1x8x128xf32>,
    %c29 = arith.constant 29 : index
    %132 = memref.load %arg1[%c29] : memref<48xf32, #tpu.memory_space<smem>>
    %133 = vector.broadcast %132 : f32 to vector<8x128xf32>
    %134 = arith.mulf %100, %133 : vector<8x128xf32>
    %c34 = arith.constant 34 : index
    %135 = memref.load %arg1[%c34] : memref<48xf32, #tpu.memory_space<smem>>
    %136 = vector.broadcast %135 : f32 to vector<8x128xf32>
    %137 = arith.mulf %107, %136 : vector<8x128xf32>
    %138 = arith.addf %134, %137 : vector<8x128xf32>
    %c39 = arith.constant 39 : index
    %139 = memref.load %arg1[%c39] : memref<48xf32, #tpu.memory_space<smem>>
    %140 = vector.broadcast %139 : f32 to vector<8x128xf32>
    %141 = arith.mulf %114, %140 : vector<8x128xf32>
    %142 = arith.addf %138, %141 : vector<8x128xf32>
    %c44 = arith.constant 44 : index
    %143 = memref.load %arg1[%c44] : memref<48xf32, #tpu.memory_space<smem>>
    %144 = vector.broadcast %143 : f32 to vector<8x128xf32>
    %145 = arith.addf %142, %144 : vector<8x128xf32>
    %c1_18 = arith.constant 1 : index
    %c0_19 = arith.constant 0 : index
    %c0_20 = arith.constant 0 : index
    %146 = vector.load %arg3[%c1_18, %c0_19, %c0_20] : memref<5x8x128xf32, #tpu.memory_space<vmem>>, vector<1x8x128xf32>
    %147 = vector.shape_cast %146 : vector<1x8x128xf32> to vector<8x128xf32>
    %148 = vector.shape_cast %145 : vector<8x128xf32> to vector<1x8x128xf32>
    tpu.vector_store %arg3[%c1_18, %c0_19, %c0_20], %148 {strides = array<i32>} : memref<5x8x128xf32, #tpu.memory_space<vmem>>, vector<1x8x128xf32>,
    %c30 = arith.constant 30 : index
    %149 = memref.load %arg1[%c30] : memref<48xf32, #tpu.memory_space<smem>>
    %150 = vector.broadcast %149 : f32 to vector<8x128xf32>
    %151 = arith.mulf %100, %150 : vector<8x128xf32>
    %c35 = arith.constant 35 : index
    %152 = memref.load %arg1[%c35] : memref<48xf32, #tpu.memory_space<smem>>
    %153 = vector.broadcast %152 : f32 to vector<8x128xf32>
    %154 = arith.mulf %107, %153 : vector<8x128xf32>
    %155 = arith.addf %151, %154 : vector<8x128xf32>
    %c40 = arith.constant 40 : index
    %156 = memref.load %arg1[%c40] : memref<48xf32, #tpu.memory_space<smem>>
    %157 = vector.broadcast %156 : f32 to vector<8x128xf32>
    %158 = arith.mulf %114, %157 : vector<8x128xf32>
    %159 = arith.addf %155, %158 : vector<8x128xf32>
    %c45 = arith.constant 45 : index
    %160 = memref.load %arg1[%c45] : memref<48xf32, #tpu.memory_space<smem>>
    %161 = vector.broadcast %160 : f32 to vector<8x128xf32>
    %162 = arith.addf %159, %161 : vector<8x128xf32>
    %c2_21 = arith.constant 2 : index
    %c0_22 = arith.constant 0 : index
    %c0_23 = arith.constant 0 : index
    %163 = vector.load %arg3[%c2_21, %c0_22, %c0_23] : memref<5x8x128xf32, #tpu.memory_space<vmem>>, vector<1x8x128xf32>
    %164 = vector.shape_cast %163 : vector<1x8x128xf32> to vector<8x128xf32>
    %165 = vector.shape_cast %162 : vector<8x128xf32> to vector<1x8x128xf32>
    tpu.vector_store %arg3[%c2_21, %c0_22, %c0_23], %165 {strides = array<i32>} : memref<5x8x128xf32, #tpu.memory_space<vmem>>, vector<1x8x128xf32>,
    %c31 = arith.constant 31 : index
    %166 = memref.load %arg1[%c31] : memref<48xf32, #tpu.memory_space<smem>>
    %167 = vector.broadcast %166 : f32 to vector<8x128xf32>
    %168 = arith.mulf %100, %167 : vector<8x128xf32>
    %c36 = arith.constant 36 : index
    %169 = memref.load %arg1[%c36] : memref<48xf32, #tpu.memory_space<smem>>
    %170 = vector.broadcast %169 : f32 to vector<8x128xf32>
    %171 = arith.mulf %107, %170 : vector<8x128xf32>
    %172 = arith.addf %168, %171 : vector<8x128xf32>
    %c41 = arith.constant 41 : index
    %173 = memref.load %arg1[%c41] : memref<48xf32, #tpu.memory_space<smem>>
    %174 = vector.broadcast %173 : f32 to vector<8x128xf32>
    %175 = arith.mulf %114, %174 : vector<8x128xf32>
    %176 = arith.addf %172, %175 : vector<8x128xf32>
    %c46 = arith.constant 46 : index
    %177 = memref.load %arg1[%c46] : memref<48xf32, #tpu.memory_space<smem>>
    %178 = vector.broadcast %177 : f32 to vector<8x128xf32>
    %179 = arith.addf %176, %178 : vector<8x128xf32>
    %c3_24 = arith.constant 3 : index
    %c0_25 = arith.constant 0 : index
    %c0_26 = arith.constant 0 : index
    %180 = vector.load %arg3[%c3_24, %c0_25, %c0_26] : memref<5x8x128xf32, #tpu.memory_space<vmem>>, vector<1x8x128xf32>
    %181 = vector.shape_cast %180 : vector<1x8x128xf32> to vector<8x128xf32>
    %182 = vector.shape_cast %179 : vector<8x128xf32> to vector<1x8x128xf32>
    tpu.vector_store %arg3[%c3_24, %c0_25, %c0_26], %182 {strides = array<i32>} : memref<5x8x128xf32, #tpu.memory_space<vmem>>, vector<1x8x128xf32>,
    %c32 = arith.constant 32 : index
    %183 = memref.load %arg1[%c32] : memref<48xf32, #tpu.memory_space<smem>>
    %184 = vector.broadcast %183 : f32 to vector<8x128xf32>
    %185 = arith.mulf %100, %184 : vector<8x128xf32>
    %c37 = arith.constant 37 : index
    %186 = memref.load %arg1[%c37] : memref<48xf32, #tpu.memory_space<smem>>
    %187 = vector.broadcast %186 : f32 to vector<8x128xf32>
    %188 = arith.mulf %107, %187 : vector<8x128xf32>
    %189 = arith.addf %185, %188 : vector<8x128xf32>
    %c42 = arith.constant 42 : index
    %190 = memref.load %arg1[%c42] : memref<48xf32, #tpu.memory_space<smem>>
    %191 = vector.broadcast %190 : f32 to vector<8x128xf32>
    %192 = arith.mulf %114, %191 : vector<8x128xf32>
    %193 = arith.addf %189, %192 : vector<8x128xf32>
    %c47 = arith.constant 47 : index
    %194 = memref.load %arg1[%c47] : memref<48xf32, #tpu.memory_space<smem>>
    %195 = vector.broadcast %194 : f32 to vector<8x128xf32>
    %196 = arith.addf %193, %195 : vector<8x128xf32>
    %c4_27 = arith.constant 4 : index
    %c0_28 = arith.constant 0 : index
    %c0_29 = arith.constant 0 : index
    %197 = vector.load %arg3[%c4_27, %c0_28, %c0_29] : memref<5x8x128xf32, #tpu.memory_space<vmem>>, vector<1x8x128xf32>
    %198 = vector.shape_cast %197 : vector<1x8x128xf32> to vector<8x128xf32>
    %199 = vector.shape_cast %196 : vector<8x128xf32> to vector<1x8x128xf32>
    tpu.vector_store %arg3[%c4_27, %c0_28, %c0_29], %199 {strides = array<i32>} : memref<5x8x128xf32, #tpu.memory_space<vmem>>, vector<1x8x128xf32>,
    return
  }
  func.func @transform_0(%arg0: i32) -> i32 {
    %c0_i32 = arith.constant 0 : i32
    %c0_i32_0 = arith.constant 0 : i32
    return %c0_i32 : i32
  }
  func.func @transform_1(%arg0: i32) -> (i32, i32, i32) {
    %c0_i32 = arith.constant 0 : i32
    %c0_i32_0 = arith.constant 0 : i32
    %c0_i32_1 = arith.constant 0 : i32
    return %c0_i32, %arg0, %c0_i32_0 : i32, i32, i32
  }
  func.func @transform_2(%arg0: i32) -> (i32, i32, i32) {
    %c0_i32 = arith.constant 0 : i32
    %c0_i32_0 = arith.constant 0 : i32
    %c0_i32_1 = arith.constant 0 : i32
    return %c0_i32, %arg0, %c0_i32_0 : i32, i32, i32
  }
}

</mosaic_0001>

<llo_original>
// kernel: tpu_custom_call.1
$region0: #{tpu_custom_call.1}
  #allocation0 [shape = 'u32[]', space=smem, size = 0x4, offset = 0x4, fixed_abs, tag = 'smem constant byte address 0x4 - core index']
  #allocation1 [shape = 'u32[72,128]{1,0:T(1,128)}', space=vmem, size = 0x9000, scoped, tag = 'internal scratch']
  %s0 = inlined_call_operand.hbm [shape: f32[48], index: 0, kind: input, shape index: {}]
  %s1 = inlined_call_operand.hbm [shape: f32[5,8,128], index: 1, kind: input, shape index: {}]
  %s2 = inlined_call_operand.hbm [shape: f32[5,8,128], index: 2, kind: output, shape index: {}]
  %s3 = sld [smem:[#allocation0]]
  $region26: #{tpu_custom_call.1} parent=0
    _
  %s5 = ssub.s32 1, %s3
  %s6 = scalar_select 0, %s5, %s3
  $region1: #{tpu_custom_call.1} parent=0
    #allocation2 [shape = 'u8[512]{0}', space=smem, size = 0x200, scoped, tag = 'input window, operand 0, single buffered']
    #allocation3 [shape = 's32[1]{0}', space=sflag, size = 0x4, scoped, tag = 'scoped memory for tpu_custom_call.1']
    #allocation4 [shape = 's32[1]{0}', space=sflag, size = 0x4, scoped, tag = 'scoped memory for tpu_custom_call.1']
    #allocation5 [shape = 's32[1]{0}', space=sflag, size = 0x4, scoped, tag = 'scoped memory for tpu_custom_call.1']
    #allocation6 [shape = 'u8[20480]{0}', space=vmem, size = 0x5000, scoped, tag = 'input window, operand 1, single buffered']
    #allocation7 [shape = 'u8[20480]{0}', space=vmem, size = 0x5000, scoped, tag = 'output window, operand 0, single buffered']
    %7 = vsyncpa [#allocation5], 0
    %8 = vsyncpa [#allocation3], 0
    %9 = vsyncpa [#allocation4], 0
    // Predicated region
    $region2: #{tpu_custom_call.1} parent=1 // pred_check
      _
    $region3: #{tpu_custom_call.1} parent=1 // pred_check_branch
      %11 = sbr.rel (0) target = $region5
    $region4: #{tpu_custom_call.1} parent=1 // pred_region
      %13 = vsyncadd [#allocation5], 0
      %s15 = sshll.u32 %s0, 4
      %s16 = int_to_ptr.hbm [resolvable:$true] %s15
      %18 = dma.hbm_to_smem %s16, 16, [#allocation2], [#allocation5]
    $region5: #{tpu_custom_call.1} parent=1 // pred_fallthru
      _
    // Predicated region
    $region6: #{tpu_custom_call.1} parent=1 // pred_check
      _
    $region7: #{tpu_custom_call.1} parent=1 // pred_check_branch
      %20 = sbr.rel (0) target = $region9
    $region8: #{tpu_custom_call.1} parent=1 // pred_region
      %22 = vsyncadd [#allocation3], 0
      %s23 = sshll.u32 %s1, 4
      %s24 = int_to_ptr.hbm [resolvable:$true] %s23
      %s25 = sshll.u32 [#allocation6], 4
      %s26 = int_to_ptr.vmem [resolvable:$true] %s25
      %31 = dma.hbm_to_vmem [thread:$0]  %s24, 640, %s26, [#allocation3], 128, 128, 8
    $region9: #{tpu_custom_call.1} parent=1 // pred_fallthru
      _
    // Predicated region
    $region10: #{tpu_custom_call.1} parent=1 // pred_check
      _
    $region11: #{tpu_custom_call.1} parent=1 // pred_check_branch
      %33 = sbr.rel (0) target = $region13
    $region12: #{tpu_custom_call.1} parent=1 // pred_region
      %35 = dma.done [#allocation5], 16
    $region13: #{tpu_custom_call.1} parent=1 // pred_fallthru
      _
    // Predicated region
    $region14: #{tpu_custom_call.1} parent=1 // pred_check
      _
    $region15: #{tpu_custom_call.1} parent=1 // pred_check_branch
      %37 = sbr.rel (0) target = $region17
    $region16: #{tpu_custom_call.1} parent=1 // pred_region
      %39 = dma.done [#allocation3], 640
    $region17: #{tpu_custom_call.1} parent=1 // pred_fallthru
      _
    %40 = sfence
    %v41 = vld [vmem:[#allocation6] sm:$0xff]
    %s42 = scalar_lea.vmem [#allocation6], 8
    %v43 = vld [vmem:[%s42] sm:$0xff]
    %s44 = scalar_lea.vmem [#allocation6], 16
    %v45 = vld [vmem:[%s44] sm:$0xff]
    %s46 = scalar_lea.vmem [#allocation6], 24
    %v47 = vld [vmem:[%s46] sm:$0xff]
    %s48 = scalar_lea.vmem [#allocation6], 32
    %v49 = vld [vmem:[%s48] sm:$0xff]
    %s50 = sld [smem:[#allocation2]]
    %v51 = vstv %s50
    %v52 = vmul.f32 %v41, %v51
    %s53 = sld [smem:[#allocation2 + $0x3]]
    %v54 = vstv %s53
    %v55 = vmul.f32 %v43, %v54
    %v56 = vadd.f32 %v52, %v55
    %s57 = sld [smem:[#allocation2 + $0x6]]
    %v58 = vstv %s57
    %v59 = vmul.f32 %v45, %v58
    %v60 = vadd.f32 %v56, %v59
    %s61 = sld [smem:[#allocation2 + $0x9]]
    %v62 = vstv %s61
    %v63 = vmul.f32 %v47, %v62
    %v64 = vadd.f32 %v60, %v63
    %s65 = sld [smem:[#allocation2 + $0xc]]
    %v66 = vstv %s65
    %v67 = vmul.f32 %v49, %v66
    %v68 = vadd.f32 %v64, %v67
    %s69 = sld [smem:[#allocation2 + $0xf]]
    %v70 = vstv %s69
    %v71 = vadd.f32 %v68, %v70
    %v72 = vtanh.pop %v71
    %s73 = sld [smem:[#allocation2 + $0x1]]
    %v74 = vstv %s73
    %v75 = vmul.f32 %v41, %v74
    %s76 = sld [smem:[#allocation2 + $0x4]]
    %v77 = vstv %s76
    %v78 = vmul.f32 %v43, %v77
    %v79 = vadd.f32 %v75, %v78
    %s80 = sld [smem:[#allocation2 + $0x7]]
    %v81 = vstv %s80
    %v82 = vmul.f32 %v45, %v81
    %v83 = vadd.f32 %v79, %v82
    %s84 = sld [smem:[#allocation2 + $0xa]]
    %v85 = vstv %s84
    %v86 = vmul.f32 %v47, %v85
    %v87 = vadd.f32 %v83, %v86
    %s88 = sld [smem:[#allocation2 + $0xd]]
    %v89 = vstv %s88
    %v90 = vmul.f32 %v49, %v89
    %v91 = vadd.f32 %v87, %v90
    %s92 = sld [smem:[#allocation2 + $0x10]]
    %v93 = vstv %s92
    %v94 = vadd.f32 %v91, %v93
    %v95 = vtanh.pop %v94
    %s96 = sld [smem:[#allocation2 + $0x2]]
    %v97 = vstv %s96
    %v98 = vmul.f32 %v41, %v97
    %s99 = sld [smem:[#allocation2 + $0x5]]
    %v100 = vstv %s99
    %v101 = vmul.f32 %v43, %v100
    %v102 = vadd.f32 %v98, %v101
    %s103 = sld [smem:[#allocation2 + $0x8]]
    %v104 = vstv %s103
    %v105 = vmul.f32 %v45, %v104
    %v106 = vadd.f32 %v102, %v105
    %s107 = sld [smem:[#allocation2 + $0xb]]
    %v108 = vstv %s107
    %v109 = vmul.f32 %v47, %v108
    %v110 = vadd.f32 %v106, %v109
    %s111 = sld [smem:[#allocation2 + $0xe]]
    %v112 = vstv %s111
    %v113 = vmul.f32 %v49, %v112
    %v114 = vadd.f32 %v110, %v113
    %s115 = sld [smem:[#allocation2 + $0x11]]
    %v116 = vstv %s115
    %v117 = vadd.f32 %v114, %v116
    %v118 = vtanh.pop %v117
    %s119 = sld [smem:[#allocation2 + $0x12]]
    %v120 = vstv %s119
    %v121 = vmul.f32 %v72, %v120
    %s122 = sld [smem:[#allocation2 + $0x13]]
    %v123 = vstv %s122
    %v124 = vmul.f32 %v95, %v123
    %v125 = vadd.f32 %v121, %v124
    %s126 = sld [smem:[#allocation2 + $0x14]]
    %v127 = vstv %s126
    %v128 = vmul.f32 %v118, %v127
    %v129 = vadd.f32 %v125, %v128
    %s130 = sld [smem:[#allocation2 + $0x15]]
    %v131 = vstv %s130
    %v132 = vadd.f32 %v129, %v131
    %v133 = vtanh.pop %v132
    %s134 = sld [smem:[#allocation2 + $0x16]]
    %v135 = vstv %s134
    %v136 = vmul.f32 %v133, %v135
    %s137 = sld [smem:[#allocation2 + $0x19]]
    %v138 = vstv %s137
    %v139 = vadd.f32 %v136, %v138
    %v140 = vtanh.pop %v139
    %s141 = sld [smem:[#allocation2 + $0x17]]
    %v142 = vstv %s141
    %v143 = vmul.f32 %v133, %v142
    %s144 = sld [smem:[#allocation2 + $0x1a]]
    %v145 = vstv %s144
    %v146 = vadd.f32 %v143, %v145
    %v147 = vtanh.pop %v146
    %s148 = sld [smem:[#allocation2 + $0x18]]
    %v149 = vstv %s148
    %v150 = vmul.f32 %v133, %v149
    %s151 = sld [smem:[#allocation2 + $0x1b]]
    %v152 = vstv %s151
    %v153 = vadd.f32 %v150, %v152
    %v154 = vtanh.pop %v153
    %s155 = sld [smem:[#allocation2 + $0x1c]]
    %v156 = vstv %s155
    %v157 = vmul.f32 %v140, %v156
    %s158 = sld [smem:[#allocation2 + $0x21]]
    %v159 = vstv %s158
    %v160 = vmul.f32 %v147, %v159
    %v161 = vadd.f32 %v157, %v160
    %s162 = sld [smem:[#allocation2 + $0x26]]
    %v163 = vstv %s162
    %v164 = vmul.f32 %v154, %v163
    %v165 = vadd.f32 %v161, %v164
    %s166 = sld [smem:[#allocation2 + $0x2b]]
    %v167 = vstv %s166
    %v168 = vadd.f32 %v165, %v167
    %169 = vst [vmem:[#allocation7] sm:$0xff] %v168
    %s170 = sld [smem:[#allocation2 + $0x1d]]
    %v171 = vstv %s170
    %v172 = vmul.f32 %v140, %v171
    %s173 = sld [smem:[#allocation2 + $0x22]]
    %v174 = vstv %s173
    %v175 = vmul.f32 %v147, %v174
    %v176 = vadd.f32 %v172, %v175
    %s177 = sld [smem:[#allocation2 + $0x27]]
    %v178 = vstv %s177
    %v179 = vmul.f32 %v154, %v178
    %v180 = vadd.f32 %v176, %v179
    %s181 = sld [smem:[#allocation2 + $0x2c]]
    %v182 = vstv %s181
    %v183 = vadd.f32 %v180, %v182
    %s184 = scalar_lea.vmem [#allocation7], 8
    %185 = vst [vmem:[%s184] sm:$0xff] %v183
    %s186 = sld [smem:[#allocation2 + $0x1e]]
    %v187 = vstv %s186
    %v188 = vmul.f32 %v140, %v187
    %s189 = sld [smem:[#allocation2 + $0x23]]
    %v190 = vstv %s189
    %v191 = vmul.f32 %v147, %v190
    %v192 = vadd.f32 %v188, %v191
    %s193 = sld [smem:[#allocation2 + $0x28]]
    %v194 = vstv %s193
    %v195 = vmul.f32 %v154, %v194
    %v196 = vadd.f32 %v192, %v195
    %s197 = sld [smem:[#allocation2 + $0x2d]]
    %v198 = vstv %s197
    %v199 = vadd.f32 %v196, %v198
    %s200 = scalar_lea.vmem [#allocation7], 16
    %201 = vst [vmem:[%s200] sm:$0xff] %v199
    %s202 = sld [smem:[#allocation2 + $0x1f]]
    %v203 = vstv %s202
    %v204 = vmul.f32 %v140, %v203
    %s205 = sld [smem:[#allocation2 + $0x24]]
    %v206 = vstv %s205
    %v207 = vmul.f32 %v147, %v206
    %v208 = vadd.f32 %v204, %v207
    %s209 = sld [smem:[#allocation2 + $0x29]]
    %v210 = vstv %s209
    %v211 = vmul.f32 %v154, %v210
    %v212 = vadd.f32 %v208, %v211
    %s213 = sld [smem:[#allocation2 + $0x2e]]
    %v214 = vstv %s213
    %v215 = vadd.f32 %v212, %v214
    %s216 = scalar_lea.vmem [#allocation7], 24
    %217 = vst [vmem:[%s216] sm:$0xff] %v215
    %s218 = sld [smem:[#allocation2 + $0x20]]
    %v219 = vstv %s218
    %v220 = vmul.f32 %v140, %v219
    %s221 = sld [smem:[#allocation2 + $0x25]]
    %v222 = vstv %s221
    %v223 = vmul.f32 %v147, %v222
    %v224 = vadd.f32 %v220, %v223
    %s225 = sld [smem:[#allocation2 + $0x2a]]
    %v226 = vstv %s225
    %v227 = vmul.f32 %v154, %v226
    %v228 = vadd.f32 %v224, %v227
    %s229 = sld [smem:[#allocation2 + $0x2f]]
    %v230 = vstv %s229
    %v231 = vadd.f32 %v228, %v230
    %s232 = scalar_lea.vmem [#allocation7], 32
    %233 = vst [vmem:[%s232] sm:$0xff] %v231
    // Predicated region
    $region18: #{tpu_custom_call.1} parent=1 // pred_check
      _
    $region19: #{tpu_custom_call.1} parent=1 // pred_check_branch
      %235 = sbr.rel (0) target = $region21
    $region20: #{tpu_custom_call.1} parent=1 // pred_region
      %237 = vsyncadd [#allocation4], 0
      %s238 = sshll.u32 [#allocation7], 4
      %s239 = int_to_ptr.vmem [resolvable:$true] %s238
      %s240 = sshll.u32 %s2, 4
      %s241 = int_to_ptr.hbm [resolvable:$true] %s240
      %246 = dma.vmem_to_hbm [thread:$0]  %s239, 640, %s241, [#allocation4], 128, 128, 8
    $region21: #{tpu_custom_call.1} parent=1 // pred_fallthru
      _
    // Predicated region
    $region22: #{tpu_custom_call.1} parent=1 // pred_check
      _
    $region23: #{tpu_custom_call.1} parent=1 // pred_check_branch
      %248 = sbr.rel (0) target = $region25
    $region24: #{tpu_custom_call.1} parent=1 // pred_region
      %250 = dma.done [#allocation4], 640
    $region25: #{tpu_custom_call.1} parent=1 // pred_fallthru
      _
    %251 = vsyncpa [#allocation3], 1
    %252 = vsyncpa [#allocation4], 1
    %253 = vsyncpa [#allocation5], 1

</llo_original>
